<compile_context>
chip_gen: v7x
topology: tpu7x:2x2x1
jax: 0.10.0
libtpu: 0.0.40
codegen_flags: <defaults>
</compile_context>

<pallas_src>
import functools

import jax
import jax.numpy as jnp
from jax.experimental import pallas as pl
from jax.experimental.pallas import tpu as pltpu

_EPS = 1e-5  # PyTorch nn.LayerNorm default eps


def _round_up(x, m):
    return (x + m - 1) // m * m


# ----------------------------------------------------------------------------
# Kernel
# ----------------------------------------------------------------------------
def _layernorm_padded(x, gamma, beta, n_real):
    """LayerNorm over the first `n_real` lanes of x (padded lanes are zero).

    gamma/beta are zero-padded beyond n_real, so padded output lanes stay 0.
    """
    mask = (jax.lax.broadcasted_iota(jnp.int32, x.shape, 1) < n_real).astype(x.dtype)
    inv_n = jnp.float32(1.0 / n_real)
    mu = jnp.sum(x, axis=-1, keepdims=True) * inv_n          # padded lanes are 0
    c = (x - mu) * mask
    var = jnp.sum(c * c, axis=-1, keepdims=True) * inv_n
    return c * jax.lax.rsqrt(var + _EPS) * gamma + beta


def _critic_kernel(xin_ref, w_ref, v_ref, out_ref, *, s_pad, a_pad, lane, h1, h2):
    x_in = xin_ref[...]                       # (TB, s_pad + a_pad)
    s = x_in[:, :s_pad]                       # state (zero-padded lanes)
    a = x_in[:, s_pad:]                       # action (zero-padded lanes)

    # Static slices of the resident weight slab (all offsets multiples of 8).
    w1 = w_ref[0:s_pad, :]                              # (s_pad, lane)
    w2s = w_ref[s_pad:s_pad + lane, :]                  # (lane,  lane)
    w2a = w_ref[s_pad + lane:s_pad + lane + a_pad, :]   # (a_pad, lane)

    v = v_ref[...]                                      # (8, lane)
    b1, g1, be1 = v[0:1, :], v[1:2, :], v[2:3, :]
    b2, g2, be2 = v[3:4, :], v[4:5, :], v[5:6, :]
    w3 = v[6:7, :]
    b3, g3, be3 = v[7:8, 0:1], v[7:8, 1:2], v[7:8, 2:3]

    # fc1 + relu + LayerNorm(fc1_units)
    h = jnp.dot(s, w1, preferred_element_type=jnp.float32) + b1
    h = jnp.maximum(h, 0.0)
    h = _layernorm_padded(h, g1, be1, h1)

    # concat([h, action]) @ W2  ==  h @ W2_state + action @ W2_action   (fused)
    y = (jnp.dot(h, w2s, preferred_element_type=jnp.float32)
         + jnp.dot(a, w2a, preferred_element_type=jnp.float32)
         + b2)
    y = jnp.maximum(y, 0.0)
    y = _layernorm_padded(y, g2, be2, h2)

    # fc3 (output dim 1) as a lane reduction, then LayerNorm over 1 element.
    z = jnp.sum(y * w3, axis=-1, keepdims=True) + b3    # (TB, 1)
    # LayerNorm over a single feature: mean == z, var == 0  ->  output == be3.
    zn = (z - z) * jax.lax.rsqrt(jnp.zeros_like(z) + _EPS) * g3 + be3

    # Lane-dense (unmasked) store; wrapper slices column 0.
    out_ref[...] = jnp.broadcast_to(zn, out_ref.shape)


# ----------------------------------------------------------------------------
# Wrapper
# ----------------------------------------------------------------------------
def make_critic_forward(state_size, action_size, fc1_units, fc2_units, tile_b=512):
    S_PAD = _round_up(state_size, 8)
    A_PAD = _round_up(action_size, 8)
    LANE = _round_up(max(fc1_units, fc2_units, 1), 128)
    IN_PAD = S_PAD + A_PAD
    W_ROWS = S_PAD + LANE + A_PAD

    kernel = functools.partial(
        _critic_kernel, s_pad=S_PAD, a_pad=A_PAD, lane=LANE,
        h1=fc1_units, h2=fc2_units)

    @jax.jit
    def fwd(state, action, w_slab, v_slab):
        B = state.shape[0]
        TB = min(tile_b, _round_up(B, 8))
        B_pad = _round_up(B, TB)

        # Pack [state | action] into one zero-padded activation slab.
        xin = jnp.zeros((B_pad, IN_PAD), jnp.float32)
        xin = xin.at[:B, :state_size].set(state.astype(jnp.float32))
        xin = xin.at[:B, S_PAD:S_PAD + action_size].set(action.astype(jnp.float32))

        out = pl.pallas_call(
            kernel,
            out_shape=jax.ShapeDtypeStruct((B_pad, 128), jnp.float32),
            grid=(B_pad // TB,),
            in_specs=[
                pl.BlockSpec((TB, IN_PAD), lambda i: (i, 0)),     # streamed
                pl.BlockSpec((W_ROWS, LANE), lambda i: (0, 0)),   # resident
                pl.BlockSpec((8, LANE), lambda i: (0, 0)),        # resident
            ],
            out_specs=pl.BlockSpec((TB, 128), lambda i: (i, 0)),
            compiler_params=pltpu.CompilerParams(
                dimension_semantics=("parallel",)),
        )(xin, w_slab, v_slab)

        return out[:B, :1]

    return fwd


# ----------------------------------------------------------------------------
# Parameters (unpadded, mirrors the PyTorch module) + packing
# ----------------------------------------------------------------------------
def init_params(key, state_size, action_size, fc1_units, fc2_units):
    """Deterministic synthetic init mirroring the PyTorch module's shapes.

    Note: hidden_init() in the reference uses weight.size()[0] (= out_features)
    as 'fan_in'; we reproduce the same limits for determinism.
    """
    ks = jax.random.split(key, 6)

    def u(k, shape, lim):
        return jax.random.uniform(k, shape, jnp.float32, -lim, lim)

    lim1 = 1.0 / float(fc1_units) ** 0.5
    lim2 = 1.0 / float(fc2_units) ** 0.5

    # weights stored as (in, out) so the kernel computes x @ W
    return {
        "w1": u(ks[0], (state_size, fc1_units), lim1),
        "b1": u(ks[1], (1, fc1_units), lim1),
        "g1": jnp.ones((1, fc1_units), jnp.float32),
        "be1": jnp.zeros((1, fc1_units), jnp.float32),
        "w2": u(ks[2], (fc1_units + action_size, fc2_units), lim2),
        "b2": u(ks[3], (1, fc2_units), lim2),
        "g2": jnp.ones((1, fc2_units), jnp.float32),
        "be2": jnp.zeros((1, fc2_units), jnp.float32),
        "w3": u(ks[4], (fc2_units, 1), 0.003),
        "b3": u(ks[5], (1, 1), 0.003),
        "g3": jnp.ones((1, 1), jnp.float32),
        "be3": jnp.zeros((1, 1), jnp.float32),
    }


def pack_params(p, state_size, action_size, fc1_units, fc2_units):
    """Pack all parameters into two lane-aligned slabs for the kernel."""
    S_PAD = _round_up(state_size, 8)
    A_PAD = _round_up(action_size, 8)
    LANE = _round_up(max(fc1_units, fc2_units, 1), 128)

    w_slab = jnp.zeros((S_PAD + LANE + A_PAD, LANE), jnp.float32)
    w_slab = w_slab.at[:state_size, :fc1_units].set(p["w1"])
    w_slab = w_slab.at[S_PAD:S_PAD + fc1_units, :fc2_units].set(p["w2"][:fc1_units])
    w_slab = w_slab.at[S_PAD + LANE:S_PAD + LANE + action_size,
                       :fc2_units].set(p["w2"][fc1_units:])

    v_slab = jnp.zeros((8, LANE), jnp.float32)
    v_slab = v_slab.at[0, :fc1_units].set(p["b1"].reshape(-1))
    v_slab = v_slab.at[1, :fc1_units].set(p["g1"].reshape(-1))
    v_slab = v_slab.at[2, :fc1_units].set(p["be1"].reshape(-1))
    v_slab = v_slab.at[3, :fc2_units].set(p["b2"].reshape(-1))
    v_slab = v_slab.at[4, :fc2_units].set(p["g2"].reshape(-1))
    v_slab = v_slab.at[5, :fc2_units].set(p["be2"].reshape(-1))
    v_slab = v_slab.at[6, :fc2_units].set(p["w3"].reshape(-1))
    v_slab = v_slab.at[7, 0].set(p["b3"].reshape(()))
    v_slab = v_slab.at[7, 1].set(p["g3"].reshape(()))
    v_slab = v_slab.at[7, 2].set(p["be3"].reshape(()))
    return w_slab, v_slab


# ----------------------------------------------------------------------------
# Pure-JAX reference (matches the PyTorch forward)
# ----------------------------------------------------------------------------
def _layernorm(x, gamma, beta):
    mu = jnp.mean(x, axis=-1, keepdims=True)
    var = jnp.mean((x - mu) * (x - mu), axis=-1, keepdims=True)
    return (x - mu) * jax.lax.rsqrt(var + _EPS) * gamma + beta


def critic_reference(state, action, p):
    x = jnp.maximum(state @ p["w1"] + p["b1"], 0.0)
    x = _layernorm(x, p["g1"], p["be1"])
    x = jnp.concatenate([x, action], axis=1)
    y = jnp.maximum(x @ p["w2"] + p["b2"], 0.0)
    y = _layernorm(y, p["g2"], p["be2"])
    z = y @ p["w3"] + p["b3"]
    return _layernorm(z, p["g3"], p["be3"])


if __name__ == "__main__":
    state_size, action_size = 8, 4
    fc1_units, fc2_units = 32, 32
    batch = 8

    key = jax.random.PRNGKey(0)
    k_state, k_action, k_params = jax.random.split(key, 3)

    state = jax.random.normal(k_state, (batch, state_size), jnp.float32)
    action = jax.random.normal(k_action, (batch, action_size), jnp.float32)

    params = init_params(k_params, state_size, action_size, fc1_units, fc2_units)
    w_slab, v_slab = pack_params(params, state_size, action_size,
                                 fc1_units, fc2_units)

    critic_forward = make_critic_forward(state_size, action_size,
                                         fc1_units, fc2_units)
    out = jax.block_until_ready(critic_forward(state, action, w_slab, v_slab))

    ref = critic_reference(state, action, params)
    assert out.shape == (batch, 1), out.shape
    assert jnp.allclose(out, ref, atol=1e-5, rtol=1e-5), (out, ref)

    print("KERNEL_OK")
</pallas_src>

<mosaic_0001>
module attributes {stable_mosaic.version = 11 : i64} {
  func.func @_critic_kernel(%arg0: i32, %arg1: memref<8x16xf32, #tpu.memory_space<vmem>>, %arg2: memref<144x128xf32, #tpu.memory_space<vmem>>, %arg3: memref<8x128xf32, #tpu.memory_space<vmem>>, %arg4: memref<8x128xf32, #tpu.memory_space<vmem>>) attributes {dimension_semantics = [#tpu.dimension_semantics<parallel>], iteration_bounds = array<i64: 1>, scalar_prefetch = 0 : i64, scratch_operands = 0 : i64, tpu.core_type = #tpu.core_type<tc>, window_params = [{transform_indices = @transform_0, window_bounds = array<i64: 8, 16>}, {pipeline_mode = #tpu.pipeline_mode<synchronous>, transform_indices = @transform_1, window_bounds = array<i64: 144, 128>}, {pipeline_mode = #tpu.pipeline_mode<synchronous>, transform_indices = @transform_2, window_bounds = array<i64: 8, 128>}, {transform_indices = @transform_3, window_bounds = array<i64: 8, 128>}]} {
    %c0 = arith.constant 0 : index
    %c0_0 = arith.constant 0 : index
    %0 = vector.load %arg1[%c0, %c0_0] : memref<8x16xf32, #tpu.memory_space<vmem>>, vector<8x16xf32>
    %1 = vector.extract_strided_slice %0 {offsets = [0, 0], sizes = [8, 8], strides = [1, 1]} : vector<8x16xf32> to vector<8x8xf32>
    %2 = vector.extract_strided_slice %0 {offsets = [0, 8], sizes = [8, 8], strides = [1, 1]} : vector<8x16xf32> to vector<8x8xf32>
    %c0_1 = arith.constant 0 : index
    %c0_2 = arith.constant 0 : index
    %3 = vector.load %arg2[%c0_1, %c0_2] : memref<144x128xf32, #tpu.memory_space<vmem>>, vector<8x128xf32>
    %c8 = arith.constant 8 : index
    %c0_3 = arith.constant 0 : index
    %4 = vector.load %arg2[%c8, %c0_3] : memref<144x128xf32, #tpu.memory_space<vmem>>, vector<128x128xf32>
    %c136 = arith.constant 136 : index
    %c0_4 = arith.constant 0 : index
    %5 = vector.load %arg2[%c136, %c0_4] : memref<144x128xf32, #tpu.memory_space<vmem>>, vector<8x128xf32>
    %c0_5 = arith.constant 0 : index
    %c0_6 = arith.constant 0 : index
    %6 = vector.load %arg3[%c0_5, %c0_6] : memref<8x128xf32, #tpu.memory_space<vmem>>, vector<8x128xf32>
    %7 = vector.extract_strided_slice %6 {offsets = [0, 0], sizes = [1, 128], strides = [1, 1]} : vector<8x128xf32> to vector<1x128xf32>
    %8 = vector.extract_strided_slice %6 {offsets = [1, 0], sizes = [1, 128], strides = [1, 1]} : vector<8x128xf32> to vector<1x128xf32>
    %9 = vector.extract_strided_slice %6 {offsets = [2, 0], sizes = [1, 128], strides = [1, 1]} : vector<8x128xf32> to vector<1x128xf32>
    %10 = vector.extract_strided_slice %6 {offsets = [3, 0], sizes = [1, 128], strides = [1, 1]} : vector<8x128xf32> to vector<1x128xf32>
    %11 = vector.extract_strided_slice %6 {offsets = [4, 0], sizes = [1, 128], strides = [1, 1]} : vector<8x128xf32> to vector<1x128xf32>
    %12 = vector.extract_strided_slice %6 {offsets = [5, 0], sizes = [1, 128], strides = [1, 1]} : vector<8x128xf32> to vector<1x128xf32>
    %13 = vector.extract_strided_slice %6 {offsets = [6, 0], sizes = [1, 128], strides = [1, 1]} : vector<8x128xf32> to vector<1x128xf32>
    %14 = vector.extract_strided_slice %6 {offsets = [7, 0], sizes = [1, 1], strides = [1, 1]} : vector<8x128xf32> to vector<1x1xf32>
    %15 = vector.extract_strided_slice %6 {offsets = [7, 1], sizes = [1, 1], strides = [1, 1]} : vector<8x128xf32> to vector<1x1xf32>
    %16 = vector.extract_strided_slice %6 {offsets = [7, 2], sizes = [1, 1], strides = [1, 1]} : vector<8x128xf32> to vector<1x1xf32>
    %cst = arith.constant dense<0.000000e+00> : vector<8x128xf32>
    %17 = tpu.matmul %1, %3, %cst {dimension_numbers = #tpu.dot_dimension_numbers<[1], [0], [0], [1], [0, 0, 1, 1], [], []>} : vector<8x8xf32>, vector<8x128xf32>, vector<8x128xf32> -> vector<8x128xf32>
    %18 = vector.broadcast %7 : vector<1x128xf32> to vector<8x128xf32>
    %19 = arith.addf %17, %18 : vector<8x128xf32>
    %cst_7 = arith.constant 0.000000e+00 : f32
    %20 = vector.broadcast %cst_7 : f32 to vector<8x128xf32>
    %21 = arith.maximumf %19, %20 : vector<8x128xf32>
    %22 = tpu.iota {dimensions = array<i32: 1>} : vector<8x128xi32>
    %c32_i32 = arith.constant 32 : i32
    %23 = vector.broadcast %c32_i32 : i32 to vector<8x128xi32>
    %24 = arith.cmpi slt, %22, %23 : vector<8x128xi32>
    %25 = arith.extui %24 : vector<8x128xi1> to vector<8x128xi32>
    %26 = arith.sitofp %25 : vector<8x128xi32> to vector<8x128xf32>
    %cst_8 = arith.constant dense<0.000000e+00> : vector<8xf32>
    %27 = vector.multi_reduction <add>, %21, %cst_8 [1] : vector<8x128xf32> to vector<8xf32>
    %28 = vector.shape_cast %27 : vector<8xf32> to vector<8x1xf32>
    %cst_9 = arith.constant 3.125000e-02 : f32
    %29 = vector.broadcast %cst_9 : f32 to vector<8x1xf32>
    %30 = arith.mulf %28, %29 : vector<8x1xf32>
    %31 = vector.broadcast %30 : vector<8x1xf32> to vector<8x128xf32>
    %32 = arith.subf %21, %31 : vector<8x128xf32>
    %33 = arith.mulf %32, %26 : vector<8x128xf32>
    %34 = arith.mulf %33, %33 : vector<8x128xf32>
    %cst_10 = arith.constant dense<0.000000e+00> : vector<8xf32>
    %35 = vector.multi_reduction <add>, %34, %cst_10 [1] : vector<8x128xf32> to vector<8xf32>
    %36 = vector.shape_cast %35 : vector<8xf32> to vector<8x1xf32>
    %cst_11 = arith.constant 3.125000e-02 : f32
    %37 = vector.broadcast %cst_11 : f32 to vector<8x1xf32>
    %38 = arith.mulf %36, %37 : vector<8x1xf32>
    %cst_12 = arith.constant 9.99999974E-6 : f32
    %39 = vector.broadcast %cst_12 : f32 to vector<8x1xf32>
    %40 = arith.addf %38, %39 : vector<8x1xf32>
    %41 = math.rsqrt %40 : vector<8x1xf32>
    %42 = vector.broadcast %41 : vector<8x1xf32> to vector<8x128xf32>
    %43 = arith.mulf %33, %42 : vector<8x128xf32>
    %44 = vector.broadcast %8 : vector<1x128xf32> to vector<8x128xf32>
    %45 = arith.mulf %43, %44 : vector<8x128xf32>
    %46 = vector.broadcast %9 : vector<1x128xf32> to vector<8x128xf32>
    %47 = arith.addf %45, %46 : vector<8x128xf32>
    %cst_13 = arith.constant dense<0.000000e+00> : vector<8x128xf32>
    %48 = tpu.matmul %47, %4, %cst_13 {dimension_numbers = #tpu.dot_dimension_numbers<[1], [0], [0], [1], [0, 0, 1, 1], [], []>} : vector<8x128xf32>, vector<128x128xf32>, vector<8x128xf32> -> vector<8x128xf32>
    %cst_14 = arith.constant dense<0.000000e+00> : vector<8x128xf32>
    %49 = tpu.matmul %2, %5, %cst_14 {dimension_numbers = #tpu.dot_dimension_numbers<[1], [0], [0], [1], [0, 0, 1, 1], [], []>} : vector<8x8xf32>, vector<8x128xf32>, vector<8x128xf32> -> vector<8x128xf32>
    %50 = arith.addf %48, %49 : vector<8x128xf32>
    %51 = vector.broadcast %10 : vector<1x128xf32> to vector<8x128xf32>
    %52 = arith.addf %50, %51 : vector<8x128xf32>
    %cst_15 = arith.constant 0.000000e+00 : f32
    %53 = vector.broadcast %cst_15 : f32 to vector<8x128xf32>
    %54 = arith.maximumf %52, %53 : vector<8x128xf32>
    %55 = tpu.iota {dimensions = array<i32: 1>} : vector<8x128xi32>
    %c32_i32_16 = arith.constant 32 : i32
    %56 = vector.broadcast %c32_i32_16 : i32 to vector<8x128xi32>
    %57 = arith.cmpi slt, %55, %56 : vector<8x128xi32>
    %58 = arith.extui %57 : vector<8x128xi1> to vector<8x128xi32>
    %59 = arith.sitofp %58 : vector<8x128xi32> to vector<8x128xf32>
    %cst_17 = arith.constant dense<0.000000e+00> : vector<8xf32>
    %60 = vector.multi_reduction <add>, %54, %cst_17 [1] : vector<8x128xf32> to vector<8xf32>
    %61 = vector.shape_cast %60 : vector<8xf32> to vector<8x1xf32>
    %cst_18 = arith.constant 3.125000e-02 : f32
    %62 = vector.broadcast %cst_18 : f32 to vector<8x1xf32>
    %63 = arith.mulf %61, %62 : vector<8x1xf32>
    %64 = vector.broadcast %63 : vector<8x1xf32> to vector<8x128xf32>
    %65 = arith.subf %54, %64 : vector<8x128xf32>
    %66 = arith.mulf %65, %59 : vector<8x128xf32>
    %67 = arith.mulf %66, %66 : vector<8x128xf32>
    %cst_19 = arith.constant dense<0.000000e+00> : vector<8xf32>
    %68 = vector.multi_reduction <add>, %67, %cst_19 [1] : vector<8x128xf32> to vector<8xf32>
    %69 = vector.shape_cast %68 : vector<8xf32> to vector<8x1xf32>
    %cst_20 = arith.constant 3.125000e-02 : f32
    %70 = vector.broadcast %cst_20 : f32 to vector<8x1xf32>
    %71 = arith.mulf %69, %70 : vector<8x1xf32>
    %cst_21 = arith.constant 9.99999974E-6 : f32
    %72 = vector.broadcast %cst_21 : f32 to vector<8x1xf32>
    %73 = arith.addf %71, %72 : vector<8x1xf32>
    %74 = math.rsqrt %73 : vector<8x1xf32>
    %75 = vector.broadcast %74 : vector<8x1xf32> to vector<8x128xf32>
    %76 = arith.mulf %66, %75 : vector<8x128xf32>
    %77 = vector.broadcast %11 : vector<1x128xf32> to vector<8x128xf32>
    %78 = arith.mulf %76, %77 : vector<8x128xf32>
    %79 = vector.broadcast %12 : vector<1x128xf32> to vector<8x128xf32>
    %80 = arith.addf %78, %79 : vector<8x128xf32>
    %81 = vector.broadcast %13 : vector<1x128xf32> to vector<8x128xf32>
    %82 = arith.mulf %80, %81 : vector<8x128xf32>
    %cst_22 = arith.constant dense<0.000000e+00> : vector<8xf32>
    %83 = vector.multi_reduction <add>, %82, %cst_22 [1] : vector<8x128xf32> to vector<8xf32>
    %84 = vector.shape_cast %83 : vector<8xf32> to vector<8x1xf32>
    %85 = vector.broadcast %14 : vector<1x1xf32> to vector<8x1xf32>
    %86 = arith.addf %84, %85 : vector<8x1xf32>
    %87 = arith.subf %86, %86 : vector<8x1xf32>
    %cst_23 = arith.constant 0.000000e+00 : f32
    %88 = vector.broadcast %cst_23 : f32 to vector<8x1xf32>
    %cst_24 = arith.constant 9.99999974E-6 : f32
    %89 = vector.broadcast %cst_24 : f32 to vector<8x1xf32>
    %90 = arith.addf %88, %89 : vector<8x1xf32>
    %91 = math.rsqrt %90 : vector<8x1xf32>
    %92 = arith.mulf %87, %91 : vector<8x1xf32>
    %93 = vector.broadcast %15 : vector<1x1xf32> to vector<8x1xf32>
    %94 = arith.mulf %92, %93 : vector<8x1xf32>
    %95 = vector.broadcast %16 : vector<1x1xf32> to vector<8x1xf32>
    %96 = arith.addf %94, %95 : vector<8x1xf32>
    %97 = vector.shape_cast %96 : vector<8x1xf32> to vector<8x1xf32>
    %98 = vector.broadcast %97 : vector<8x1xf32> to vector<8x128xf32>
    %c0_25 = arith.constant 0 : index
    %c0_26 = arith.constant 0 : index
    %99 = vector.load %arg4[%c0_25, %c0_26] : memref<8x128xf32, #tpu.memory_space<vmem>>, vector<8x128xf32>
    tpu.vector_store %arg4[%c0_25, %c0_26], %98 {strides = array<i32>} : memref<8x128xf32, #tpu.memory_space<vmem>>, vector<8x128xf32>,
    return
  }
  func.func @transform_0(%arg0: i32) -> (i32, i32) {
    %c0_i32 = arith.constant 0 : i32
    %c0_i32_0 = arith.constant 0 : i32
    return %arg0, %c0_i32 : i32, i32
  }
  func.func @transform_1(%arg0: i32) -> (i32, i32) {
    %c0_i32 = arith.constant 0 : i32
    %c0_i32_0 = arith.constant 0 : i32
    %c0_i32_1 = arith.constant 0 : i32
    return %c0_i32, %c0_i32_0 : i32, i32
  }
  func.func @transform_2(%arg0: i32) -> (i32, i32) {
    %c0_i32 = arith.constant 0 : i32
    %c0_i32_0 = arith.constant 0 : i32
    %c0_i32_1 = arith.constant 0 : i32
    return %c0_i32, %c0_i32_0 : i32, i32
  }
  func.func @transform_3(%arg0: i32) -> (i32, i32) {
    %c0_i32 = arith.constant 0 : i32
    %c0_i32_0 = arith.constant 0 : i32
    return %arg0, %c0_i32 : i32, i32
  }
}

</mosaic_0001>

<llo_original>
// kernel: fwd.1
$region0: #{fwd.1}
  #allocation0 [shape = 'u32[]', space=smem, size = 0x4, offset = 0x4, fixed_abs, tag = 'smem constant byte address 0x4 - core index']
  #allocation1 [shape = 'u32[144,128]{1,0:T(1,128)}', space=vmem, size = 0x12000, scoped, tag = 'internal scratch']
  %s0 = inlined_call_operand.vmem [shape: f32[8,16], index: 0, kind: input, shape index: {}]
  %s1 = inlined_call_operand.hbm [shape: f32[144,128], index: 1, kind: input, shape index: {}]
  %s2 = inlined_call_operand.vmem [shape: f32[8,128], index: 2, kind: input, shape index: {}]
  %s3 = inlined_call_operand.vmem [shape: f32[8,128], index: 3, kind: output, shape index: {}]
  %s4 = sld [smem:[#allocation0]]
  $region26: #{fwd.1} parent=0
    _
  %s6 = ssub.s32 1, %s4
  %s7 = scalar_select 0, %s6, %s4
  $region1: #{fwd.1} parent=0
    #allocation2 [shape = 'u8[73728]{0}', space=vmem, size = 0x12000, scoped, tag = 'input window, operand 1, single buffered']
    #allocation3 [shape = 's32[1]{0}', space=sflag, size = 0x4, scoped, tag = 'scoped memory for fwd.1']
    %8 = vsyncpa [#allocation3], 0
    // Predicated region
    $region2: #{fwd.1} parent=1 // pred_check
      _
    $region3: #{fwd.1} parent=1 // pred_check_branch
      %10 = sbr.rel (0) target = $region5
    $region4: #{fwd.1} parent=1 // pred_region
      _
    $region5: #{fwd.1} parent=1 // pred_fallthru
      _
    // Predicated region
    $region6: #{fwd.1} parent=1 // pred_check
      _
    $region7: #{fwd.1} parent=1 // pred_check_branch
      %12 = sbr.rel (0) target = $region9
    $region8: #{fwd.1} parent=1 // pred_region
      %s14 = ssub.s32 2304, 2304
      %15 = vsyncadd [#allocation3], %s14
      %s16 = sshll.u32 [#allocation2], 4
      %s17 = int_to_ptr.vmem [resolvable:$true] %s16
      %22 = dma.hbm_to_vmem [thread:$0]  %s1, 2304, %s17, [#allocation3], 128, 128, 8
    $region9: #{fwd.1} parent=1 // pred_fallthru
      _
    // Predicated region
    $region10: #{fwd.1} parent=1 // pred_check
      _
    $region11: #{fwd.1} parent=1 // pred_check_branch
      %24 = sbr.rel (0) target = $region13
    $region12: #{fwd.1} parent=1 // pred_region
      _
    $region13: #{fwd.1} parent=1 // pred_fallthru
      _
    // Predicated region
    $region14: #{fwd.1} parent=1 // pred_check
      _
    $region15: #{fwd.1} parent=1 // pred_check_branch
      %26 = sbr.rel (0) target = $region17
    $region16: #{fwd.1} parent=1 // pred_region
      %27 = dma.done [#allocation3], 2304
    $region17: #{fwd.1} parent=1 // pred_fallthru
      _
    %v28 = vld [vmem:[%s0] sm:$0xff]
    %v29 = vld [vmem:[#allocation2] sm:$0xff]
    %v30 = vld [vmem:[#allocation2 + $0x8] sm:$0xff]
    %v31 = vld [vmem:[#allocation2 + $0x10] sm:$0xff]
    %v32 = vld [vmem:[#allocation2 + $0x18] sm:$0xff]
    %v33 = vld [vmem:[#allocation2 + $0x20] sm:$0xff]
    %v34 = vld [vmem:[#allocation2 + $0x28] sm:$0xff]
    %v35 = vld [vmem:[#allocation2 + $0x30] sm:$0xff]
    %v36 = vld [vmem:[#allocation2 + $0x38] sm:$0xff]
    %v37 = vld [vmem:[#allocation2 + $0x40] sm:$0xff]
    %v38 = vld [vmem:[#allocation2 + $0x48] sm:$0xff]
    %v39 = vld [vmem:[#allocation2 + $0x50] sm:$0xff]
    %v40 = vld [vmem:[#allocation2 + $0x58] sm:$0xff]
    %v41 = vld [vmem:[#allocation2 + $0x60] sm:$0xff]
    %v42 = vld [vmem:[#allocation2 + $0x68] sm:$0xff]
    %v43 = vld [vmem:[#allocation2 + $0x70] sm:$0xff]
    %v44 = vld [vmem:[#allocation2 + $0x78] sm:$0xff]
    %v45 = vld [vmem:[#allocation2 + $0x80] sm:$0xff]
    %v46 = vld [vmem:[#allocation2 + $0x88] sm:$0xff]
    %v47 = vld [vmem:[%s2] sm:$0xff]
    %v48 = vlaneseq
    %v49 = vshrl.u32 %v48, 7
    %v50 = vsub.s32 0, %v49
    %v51 = vrot.slane %v47, %v50
    %vm52 = vcmask 64512
    %v54 = vsel %vm52, %v28, 0
    %56 = vmatprep.subr.mxu0 0.0
    %57 = vmatpush1.msra.mxu0 %v29
    %58 = vmatprep.subr.mxu0 0.0
    %59 = vmatpush1.msra.mxu0 0.0
    %60 = vmatprep.subr.mxu0 0.0
    %61 = vmatpush1.msra.mxu0 0.0
    %62 = vmatprep.subr.mxu0 0.0
    %63 = vmatpush1.msra.mxu0 0.0
    %64 = vmatprep.subr.mxu0 0.0
    %65 = vmatpush1.msra.mxu0 0.0
    %66 = vmatprep.subr.mxu0 0.0
    %67 = vmatpush1.msra.mxu0 0.0
    %68 = vmatprep.subr.mxu0 0.0
    %69 = vmatpush1.msra.mxu0 0.0
    %70 = vmatprep.subr.mxu0 0.0
    %71 = vmatpush1.msra.mxu0 0.0
    %72 = vmatprep.subr.mxu0 0.0
    %73 = vmatpush1.msra.mxu0 0.0
    %74 = vmatprep.subr.mxu0 0.0
    %75 = vmatpush1.msra.mxu0 0.0
    %76 = vmatprep.subr.mxu0 0.0
    %77 = vmatpush1.msra.mxu0 0.0
    %78 = vmatprep.subr.mxu0 0.0
    %79 = vmatpush1.msra.mxu0 0.0
    %80 = vmatprep.subr.mxu0 0.0
    %81 = vmatpush1.msra.mxu0 0.0
    %82 = vmatprep.subr.mxu0 0.0
    %83 = vmatpush1.msra.mxu0 0.0
    %84 = vmatprep.subr.mxu0 0.0
    %85 = vmatpush1.msra.mxu0 0.0
    %86 = vmatprep.subr.mxu0 0.0
    %87 = vmatpush1.msra.mxu0 0.0
    %88 = vmatprep.subr.mxu0 0.0
    %89 = vmatpush1.msra.mxu0 0.0
    %90 = vmatprep.subr.mxu0 0.0
    %91 = vmatpush1.msra.mxu0 0.0
    %92 = vmatprep.subr.mxu0 0.0
    %93 = vmatpush1.msra.mxu0 0.0
    %94 = vmatprep.subr.mxu0 0.0
    %95 = vmatpush1.msra.mxu0 0.0
    %96 = vmatprep.subr.mxu0 0.0
    %97 = vmatpush1.msra.mxu0 0.0
    %98 = vmatprep.subr.mxu0 0.0
    %99 = vmatpush1.msra.mxu0 0.0
    %100 = vmatprep.subr.mxu0 0.0
    %101 = vmatpush1.msra.mxu0 0.0
    %102 = vmatprep.subr.mxu0 0.0
    %103 = vmatpush1.msra.mxu0 0.0
    %104 = vmatprep.subr.mxu0 0.0
    %105 = vmatpush1.msra.mxu0 0.0
    %106 = vmatprep.subr.mxu0 0.0
    %107 = vmatpush1.msra.mxu0 0.0
    %108 = vmatprep.subr.mxu0 0.0
    %109 = vmatpush1.msra.mxu0 0.0
    %110 = vmatprep.subr.mxu0 0.0
    %111 = vmatpush1.msra.mxu0 0.0
    %112 = vmatprep.subr.mxu0 0.0
    %113 = vmatpush1.msra.mxu0 0.0
    %114 = vmatprep.subr.mxu0 0.0
    %115 = vmatpush1.msra.mxu0 0.0
    %116 = vmatprep.subr.mxu0 0.0
    %117 = vmatpush1.msra.mxu0 0.0
    %118 = vmatprep.subr.mxu0 0.0
    %119 = vmatpush1.msra.mxu0 0.0
    %120 = vmatprep.mubr.f32.mxu0 0.0
    %121 = vmatmul.mubr.f32.gmra.mrb[0].mxu0 %v54
    %v122 = vpop.f32.mrb[0].mxu0
    %v123 = vadd.f32 %v51, %v122
    %v124 = vpop.f32.mrb[0].mxu0
    %125 = vdwg.mxu0
    %v126 = vmax.f32 %v123, 0.0
    %v127 = vlaneseq
    %v128 = vand.u32 %v127, 127
    %vm129 = vcmp.lt.s32.totalorder %v128, 32
    %v130 = vsel %vm129, 1, 0
    %v131 = vcvt.s32.f32 %v130
    %132 = vadd.xlane.f32.xlu0 %v126
    %v133 = vpop.xlane.xlu0 %132
    %v134 = vmul.f32 %v133, 0.03125
    %v135 = vsub.f32 %v126, %v134
    %v136 = vmul.f32 %v135, %v131
    %v137 = vmul.f32 %v136, %v136
    %138 = vadd.xlane.f32.xlu0 %v137
    %v139 = vpop.xlane.xlu0 %138
    %v140 = vmul.f32 %v139, 0.03125
    %v141 = vadd.f32 %v140, 1e-05
    %v142 = vrsqrt.pop %v141
    %v143 = vmul.f32 %v136, %v142
    %v144 = vlaneseq
    %v145 = vshrl.u32 %v144, 7
    %v146 = vsub.s32 1, %v145
    %v147 = vrot.slane %v47, %v146
    %v148 = vmul.f32 %v143, %v147
    %v149 = vlaneseq
    %v150 = vshrl.u32 %v149, 7
    %v151 = vsub.s32 2, %v150
    %v152 = vrot.slane %v47, %v151
    %v153 = vadd.f32 %v148, %v152
    %154 = vrot.lane.b32.xlu0 %v28, 120
    %v155 = vpop.permute.xlu0 %154
    %v156 = vsel %vm52, %v155, 0
    %158 = vmatprep.subr.mxu0 0.0
    %159 = vmatpush1.msra.mxu0 %v46
    %160 = vmatprep.subr.mxu0 0.0
    %161 = vmatpush1.msra.mxu0 0.0
    %162 = vmatprep.subr.mxu0 0.0
    %163 = vmatpush1.msra.mxu0 0.0
    %164 = vmatprep.subr.mxu0 0.0
    %165 = vmatpush1.msra.mxu0 0.0
    %166 = vmatprep.subr.mxu0 0.0
    %167 = vmatpush1.msra.mxu0 0.0
    %168 = vmatprep.subr.mxu0 0.0
    %169 = vmatpush1.msra.mxu0 0.0
    %170 = vmatprep.subr.mxu0 0.0
    %171 = vmatpush1.msra.mxu0 0.0
    %172 = vmatprep.subr.mxu0 0.0
    %173 = vmatpush1.msra.mxu0 0.0
    %174 = vmatprep.subr.mxu0 0.0
    %175 = vmatpush1.msra.mxu0 0.0
    %176 = vmatprep.subr.mxu0 0.0
    %177 = vmatpush1.msra.mxu0 0.0
    %178 = vmatprep.subr.mxu0 0.0
    %179 = vmatpush1.msra.mxu0 0.0
    %180 = vmatprep.subr.mxu0 0.0
    %181 = vmatpush1.msra.mxu0 0.0
    %182 = vmatprep.subr.mxu0 0.0
    %183 = vmatpush1.msra.mxu0 0.0
    %184 = vmatprep.subr.mxu0 0.0
    %185 = vmatpush1.msra.mxu0 0.0
    %186 = vmatprep.subr.mxu0 0.0
    %187 = vmatpush1.msra.mxu0 0.0
    %188 = vmatprep.subr.mxu0 0.0
    %189 = vmatpush1.msra.mxu0 0.0
    %190 = vmatprep.subr.mxu0 0.0
    %191 = vmatpush1.msra.mxu0 0.0
    %192 = vmatprep.subr.mxu0 0.0
    %193 = vmatpush1.msra.mxu0 0.0
    %194 = vmatprep.subr.mxu0 0.0
    %195 = vmatpush1.msra.mxu0 0.0
    %196 = vmatprep.subr.mxu0 0.0
    %197 = vmatpush1.msra.mxu0 0.0
    %198 = vmatprep.subr.mxu0 0.0
    %199 = vmatpush1.msra.mxu0 0.0
    %200 = vmatprep.subr.mxu0 0.0
    %201 = vmatpush1.msra.mxu0 0.0
    %202 = vmatprep.subr.mxu0 0.0
    %203 = vmatpush1.msra.mxu0 0.0
    %204 = vmatprep.subr.mxu0 0.0
    %205 = vmatpush1.msra.mxu0 0.0
    %206 = vmatprep.subr.mxu0 0.0
    %207 = vmatpush1.msra.mxu0 0.0
    %208 = vmatprep.subr.mxu0 0.0
    %209 = vmatpush1.msra.mxu0 0.0
    %210 = vmatprep.subr.mxu0 0.0
    %211 = vmatpush1.msra.mxu0 0.0
    %212 = vmatprep.subr.mxu0 0.0
    %213 = vmatpush1.msra.mxu0 0.0
    %214 = vmatprep.subr.mxu0 0.0
    %215 = vmatpush1.msra.mxu0 0.0
    %216 = vmatprep.subr.mxu0 0.0
    %217 = vmatpush1.msra.mxu0 0.0
    %218 = vmatprep.subr.mxu0 0.0
    %219 = vmatpush1.msra.mxu0 0.0
    %220 = vmatprep.subr.mxu0 0.0
    %221 = vmatpush1.msra.mxu0 0.0
    %222 = vmatprep.mubr.f32.mxu0 0.0
    %223 = vmatmul.mubr.f32.gmra.mrb[0].mxu0 %v156
    %v224 = vpop.f32.mrb[0].mxu0
    %v225 = vadd.f32 0.0, %v224
    %v226 = vpop.f32.mrb[0].mxu0
    %227 = vdwg.mxu0
    %228 = vmatprep.subr.mxu0 0.0
    %229 = vmatpush1.msra.mxu0 %v30
    %230 = vmatprep.subr.mxu0 0.0
    %231 = vmatpush1.msra.mxu0 %v31
    %232 = vmatprep.subr.mxu0 0.0
    %233 = vmatpush1.msra.mxu0 %v32
    %234 = vmatprep.subr.mxu0 0.0
    %235 = vmatpush1.msra.mxu0 %v33
    %236 = vmatprep.subr.mxu0 0.0
    %237 = vmatpush1.msra.mxu0 %v34
    %238 = vmatprep.subr.mxu0 0.0
    %239 = vmatpush1.msra.mxu0 %v35
    %240 = vmatprep.subr.mxu0 0.0
    %241 = vmatpush1.msra.mxu0 %v36
    %242 = vmatprep.subr.mxu0 0.0
    %243 = vmatpush1.msra.mxu0 %v37
    %244 = vmatprep.subr.mxu0 0.0
    %245 = vmatpush1.msra.mxu0 %v38
    %246 = vmatprep.subr.mxu0 0.0
    %247 = vmatpush1.msra.mxu0 %v39
    %248 = vmatprep.subr.mxu0 0.0
    %249 = vmatpush1.msra.mxu0 %v40
    %250 = vmatprep.subr.mxu0 0.0
    %251 = vmatpush1.msra.mxu0 %v41
    %252 = vmatprep.subr.mxu0 0.0
    %253 = vmatpush1.msra.mxu0 %v42
    %254 = vmatprep.subr.mxu0 0.0
    %255 = vmatpush1.msra.mxu0 %v43
    %256 = vmatprep.subr.mxu0 0.0
    %257 = vmatpush1.msra.mxu0 %v44
    %258 = vmatprep.subr.mxu0 0.0
    %259 = vmatpush1.msra.mxu0 %v45
    %260 = vmatprep.subr.mxu0 0.0
    %261 = vmatpush1.msra.mxu0 0.0
    %262 = vmatprep.subr.mxu0 0.0
    %263 = vmatpush1.msra.mxu0 0.0
    %264 = vmatprep.subr.mxu0 0.0
    %265 = vmatpush1.msra.mxu0 0.0
    %266 = vmatprep.subr.mxu0 0.0
    %267 = vmatpush1.msra.mxu0 0.0
    %268 = vmatprep.subr.mxu0 0.0
    %269 = vmatpush1.msra.mxu0 0.0
    %270 = vmatprep.subr.mxu0 0.0
    %271 = vmatpush1.msra.mxu0 0.0
    %272 = vmatprep.subr.mxu0 0.0
    %273 = vmatpush1.msra.mxu0 0.0
    %274 = vmatprep.subr.mxu0 0.0
    %275 = vmatpush1.msra.mxu0 0.0
    %276 = vmatprep.subr.mxu0 0.0
    %277 = vmatpush1.msra.mxu0 0.0
    %278 = vmatprep.subr.mxu0 0.0
    %279 = vmatpush1.msra.mxu0 0.0
    %280 = vmatprep.subr.mxu0 0.0
    %281 = vmatpush1.msra.mxu0 0.0
    %282 = vmatprep.subr.mxu0 0.0
    %283 = vmatpush1.msra.mxu0 0.0
    %284 = vmatprep.subr.mxu0 0.0
    %285 = vmatpush1.msra.mxu0 0.0
    %286 = vmatprep.subr.mxu0 0.0
    %287 = vmatpush1.msra.mxu0 0.0
    %288 = vmatprep.subr.mxu0 0.0
    %289 = vmatpush1.msra.mxu0 0.0
    %290 = vmatprep.subr.mxu0 0.0
    %291 = vmatpush1.msra.mxu0 0.0
    %292 = vmatprep.mubr.f32.mxu0 0.0
    %293 = vmatmul.mubr.f32.gmra.mrb[0].mxu0 %v153
    %v294 = vpop.f32.mrb[0].mxu0
    %v295 = vadd.f32 %v225, %v294
    %v296 = vpop.f32.mrb[0].mxu0
    %297 = vdwg.mxu0
    %v298 = vlaneseq
    %v299 = vshrl.u32 %v298, 7
    %v300 = vsub.s32 3, %v299
    %v301 = vrot.slane %v47, %v300
    %v302 = vadd.f32 %v295, %v301
    %v303 = vmax.f32 %v302, 0.0
    %304 = vadd.xlane.f32.xlu0 %v303
    %v305 = vpop.xlane.xlu0 %304
    %v306 = vmul.f32 %v305, 0.03125
    %v307 = vsub.f32 %v303, %v306
    %v308 = vmul.f32 %v307, %v131
    %v309 = vmul.f32 %v308, %v308
    %310 = vadd.xlane.f32.xlu0 %v309
    %v311 = vpop.xlane.xlu0 %310
    %v312 = vmul.f32 %v311, 0.03125
    %v313 = vadd.f32 %v312, 1e-05
    %v314 = vrsqrt.pop %v313
    %v315 = vmul.f32 %v308, %v314
    %v316 = vlaneseq
    %v317 = vshrl.u32 %v316, 7
    %v318 = vsub.s32 4, %v317
    %v319 = vrot.slane %v47, %v318
    %v320 = vmul.f32 %v315, %v319
    %v321 = vlaneseq
    %v322 = vshrl.u32 %v321, 7
    %v323 = vsub.s32 5, %v322
    %v324 = vrot.slane %v47, %v323
    %v325 = vadd.f32 %v320, %v324
    %v326 = vlaneseq
    %v327 = vshrl.u32 %v326, 7
    %v328 = vsub.s32 6, %v327
    %v329 = vrot.slane %v47, %v328
    %v330 = vmul.f32 %v325, %v329
    %331 = vadd.xlane.f32.xlu0 %v330
    %v332 = vpop.xlane.xlu0 %331
    %v333 = vlaneseq
    %v334 = vshrl.u32 %v333, 7
    %v335 = vsub.s32 7, %v334
    %v336 = vrot.slane %v47, %v335
    %v337 = vadd.f32 %v332, %v336
    %v338 = vsub.f32 %v337, %v337
    %v339 = vmul.f32 %v338, 316.22778
    %341 = vrot.lane.b32.xlu0 %v336, 127
    %v342 = vpop.permute.xlu0 %341
    %v344 = vmul.f32 %v339, %v342
    %345 = vrot.lane.b32.xlu0 %v336, 126
    %v346 = vpop.permute.xlu0 %345
    %v348 = vadd.f32 %v344, %v346
    %350 = vset.pattern.permute.xlu0 0
    %351 = vperm.xlu0 %350, %v348
    %v352 = vpop.permute.xlu0 %351
    %354 = vst [vmem:[%s3] sm:$0xff] %v352
    // Predicated region
    $region18: #{fwd.1} parent=1 // pred_check
      _
    $region19: #{fwd.1} parent=1 // pred_check_branch
      %356 = sbr.rel (0) target = $region21
    $region20: #{fwd.1} parent=1 // pred_region
      _
    $region21: #{fwd.1} parent=1 // pred_fallthru
      _
    // Predicated region
    $region22: #{fwd.1} parent=1 // pred_check
      _
    $region23: #{fwd.1} parent=1 // pred_check_branch
      %358 = sbr.rel (0) target = $region25
    $region24: #{fwd.1} parent=1 // pred_region
      _
    $region25: #{fwd.1} parent=1 // pred_fallthru
      _
    %359 = vsyncpa [#allocation3], 1

</llo_original>
